<compile_context>
chip_gen: v5e
topology: v5e:2x2
jax: 0.10.0
libtpu: 0.0.40
codegen_flags: <defaults>
</compile_context>

<pallas_src>
import functools

import jax
import jax.numpy as jnp
from jax import lax
from jax.experimental import pallas as pl
from jax.experimental.pallas import tpu as pltpu

N_SUB = 8  # pad the 2 QA outputs (start/end) up to one full sublane group


def _round_up(x, m):
    return ((x + m - 1) // m) * m


def qa_head_kernel(x_ref, w_ref, b_ref, o_ref):
    # x_ref: [tm, H]  activation tile (rows on sublanes, H on lanes)
    # w_ref: [8, H]   qa weight, rows 0/1 real, rows 2..7 zero
    # b_ref: [8, 1]   qa bias, rows 0/1 real
    # o_ref: [8, tm]  lane-dense transposed logits tile
    o_ref[...] = (
        lax.dot_general(
            w_ref[...],
            x_ref[...],
            dimension_numbers=(((1,), (1,)), ((), ())),  # contract H with H
            preferred_element_type=jnp.float32,
        )
        + b_ref[...]
    )


def prepare_qa_head_params(weight, bias):
    """Pad torch-layout Linear params (weight [2, H], bias [2]) once."""
    H = weight.shape[1]
    w_pad = jnp.zeros((N_SUB, H), weight.dtype).at[:2, :].set(weight)
    b_pad = jnp.zeros((N_SUB, 1), jnp.float32).at[:2, 0].set(bias.astype(jnp.float32))
    return w_pad, b_pad


def _choose_tile(M, tm_max):
    # Big tiles amortize per-step pipeline overhead.  Keep >= 2 grid steps when
    # possible (v7x megacore); tiles are multiples of 128 so output stores stay
    # lane-dense.  tm_max=1024 keeps double-buffered f32 x-tiles well inside
    # even v5e's 16 MiB default scoped-VMEM limit for typical H (<= 1024).
    if M >= 2 * 128:
        tm = max(128, min(tm_max, _round_up(pl.cdiv(M, 2), 128)))
    else:
        tm = _round_up(max(M, 8), 8)  # tiny problem: single full-extent block
    return tm, _round_up(M, tm)


@functools.partial(jax.jit, static_argnames=("tm_max",))
def qa_outputs_pallas(sequence_output, w_pad, b_pad, *, tm_max=1024):
    """start/end logits of Linear(H, 2) over [B, S, H] activations."""
    B, S, H = sequence_output.shape
    M = B * S
    tm, M_pad = _choose_tile(M, tm_max)

    x = sequence_output.reshape(M, H)
    if M_pad != M:
        x = jnp.pad(x, ((0, M_pad - M), (0, 0)))

    out = pl.pallas_call(
        qa_head_kernel,
        out_shape=jax.ShapeDtypeStruct((N_SUB, M_pad), jnp.float32),
        grid_spec=pltpu.PrefetchScalarGridSpec(
            num_scalar_prefetch=0,
            grid=(M_pad // tm,),
            in_specs=[
                pl.BlockSpec((tm, H), lambda i: (i, 0)),
                pl.BlockSpec((N_SUB, H), lambda i: (0, 0)),
                pl.BlockSpec((N_SUB, 1), lambda i: (0, 0)),
            ],
            out_specs=pl.BlockSpec((N_SUB, tm), lambda i: (0, i)),
        ),
        compiler_params=pltpu.CompilerParams(
            dimension_semantics=("parallel",),
        ),
    )(x, w_pad.astype(x.dtype), b_pad)

    # Rows 0 / 1 are contiguous lane-major slices (no strided gather).
    start_logits = out[0, :M].reshape(B, S)
    end_logits = out[1, :M].reshape(B, S)
    return start_logits, end_logits


def _check(B, S, H, key, initializer_range=0.02):
    k_seq, k_w = jax.random.split(key)
    # Stand-in for xlm_roberta(input_ids, attention_mask)[0]
    sequence_output = jax.random.normal(k_seq, (B, S, H), dtype=jnp.float32)
    # _init_weights: normal(0, initializer_range), zero bias.
    qa_weight = initializer_range * jax.random.normal(k_w, (2, H), dtype=jnp.float32)
    qa_bias = jnp.zeros((2,), dtype=jnp.float32)

    w_pad, b_pad = prepare_qa_head_params(qa_weight, qa_bias)
    start_logits, end_logits = qa_outputs_pallas(sequence_output, w_pad, b_pad)
    jax.block_until_ready((start_logits, end_logits))

    ref = sequence_output.reshape(B * S, H) @ qa_weight.T + qa_bias
    assert jnp.allclose(start_logits, ref[:, 0].reshape(B, S), atol=1e-5)
    assert jnp.allclose(end_logits, ref[:, 1].reshape(B, S), atol=1e-5)


if __name__ == "__main__":
    key = jax.random.PRNGKey(0)
    k0, k1 = jax.random.split(key)

    # Small shape consistent with the module (single full-extent block path).
    _check(B=2, S=8, H=32, key=k0)
    # Larger shape exercising the tiled path: 2 grid steps + remainder padding.
    _check(B=2, S=200, H=128, key=k1)

    print("KERNEL_OK")
</pallas_src>

<mosaic_0001>
module attributes {stable_mosaic.version = 11 : i64} {
  func.func @qa_head_kernel(%arg0: i32, %arg1: memref<16x32xf32, #tpu.memory_space<vmem>>, %arg2: memref<8x32xf32, #tpu.memory_space<vmem>>, %arg3: memref<8x1xf32, #tpu.memory_space<vmem>>, %arg4: memref<8x16xf32, #tpu.memory_space<vmem>>) attributes {dimension_semantics = [#tpu.dimension_semantics<parallel>], iteration_bounds = array<i64: 1>, scalar_prefetch = 0 : i64, scratch_operands = 0 : i64, tpu.core_type = #tpu.core_type<tc>, window_params = [{transform_indices = @transform_0, window_bounds = array<i64: 16, 32>}, {pipeline_mode = #tpu.pipeline_mode<synchronous>, transform_indices = @transform_1, window_bounds = array<i64: 8, 32>}, {pipeline_mode = #tpu.pipeline_mode<synchronous>, transform_indices = @transform_2, window_bounds = array<i64: 8, 1>}, {transform_indices = @transform_3, window_bounds = array<i64: 8, 16>}]} {
    %c0 = arith.constant 0 : index
    %c0_0 = arith.constant 0 : index
    %0 = vector.load %arg2[%c0, %c0_0] : memref<8x32xf32, #tpu.memory_space<vmem>>, vector<8x32xf32>
    %c0_1 = arith.constant 0 : index
    %c0_2 = arith.constant 0 : index
    %1 = vector.load %arg1[%c0_1, %c0_2] : memref<16x32xf32, #tpu.memory_space<vmem>>, vector<16x32xf32>
    %cst = arith.constant dense<0.000000e+00> : vector<8x16xf32>
    %2 = tpu.matmul %0, %1, %cst {dimension_numbers = #tpu.dot_dimension_numbers<[1], [1], [0], [0], [0, 0, 1, 0], [], []>} : vector<8x32xf32>, vector<16x32xf32>, vector<8x16xf32> -> vector<8x16xf32>
    %c0_3 = arith.constant 0 : index
    %c0_4 = arith.constant 0 : index
    %3 = vector.load %arg3[%c0_3, %c0_4] : memref<8x1xf32, #tpu.memory_space<vmem>>, vector<8x1xf32>
    %4 = vector.broadcast %3 : vector<8x1xf32> to vector<8x16xf32>
    %5 = arith.addf %2, %4 : vector<8x16xf32>
    %c0_5 = arith.constant 0 : index
    %c0_6 = arith.constant 0 : index
    %6 = vector.load %arg4[%c0_5, %c0_6] : memref<8x16xf32, #tpu.memory_space<vmem>>, vector<8x16xf32>
    tpu.vector_store %arg4[%c0_5, %c0_6], %5 {strides = array<i32>} : memref<8x16xf32, #tpu.memory_space<vmem>>, vector<8x16xf32>,
    return
  }
  func.func @transform_0(%arg0: i32) -> (i32, i32) {
    %c0_i32 = arith.constant 0 : i32
    %c0_i32_0 = arith.constant 0 : i32
    return %arg0, %c0_i32 : i32, i32
  }
  func.func @transform_1(%arg0: i32) -> (i32, i32) {
    %c0_i32 = arith.constant 0 : i32
    %c0_i32_0 = arith.constant 0 : i32
    %c0_i32_1 = arith.constant 0 : i32
    return %c0_i32, %c0_i32_0 : i32, i32
  }
  func.func @transform_2(%arg0: i32) -> (i32, i32) {
    %c0_i32 = arith.constant 0 : i32
    %c0_i32_0 = arith.constant 0 : i32
    %c0_i32_1 = arith.constant 0 : i32
    return %c0_i32, %c0_i32_0 : i32, i32
  }
  func.func @transform_3(%arg0: i32) -> (i32, i32) {
    %c0_i32 = arith.constant 0 : i32
    %c0_i32_0 = arith.constant 0 : i32
    return %c0_i32, %arg0 : i32, i32
  }
}

</mosaic_0001>

<llo_original>
// kernel: squeeze.3
$region0: #{squeeze.3}
  %s0 = inlined_call_operand.vmem [shape: f32[16], index: 0, kind: input, shape index: {}]
  %s1 = inlined_call_operand.hbm [shape: f32[2,8], index: 1, kind: output, shape index: {}]
  $region1: #{squeeze.3} parent=0
    #allocation0 [shape = 'u8[1024]{0}', space=vmem, size = 0x400, scoped, tag = 'operand span for operand 1']
    #allocation1 [shape = 's32[1]{0}', space=sflag, size = 0x4, scoped, tag = 'scoped memory for squeeze.3']
    #allocation2 [shape = 'u8[4096]{0}', space=vmem, size = 0x1000, scoped, tag = 'scoped mem for output reshape']
    #allocation3 [shape = 'u8[4096]{0}', space=vmem, size = 0x1000, scoped, tag = 'scoped mem for input reshape']
    %2 = vsyncpa [#allocation1], 0
    %s4 = ssub.s32 2, 1
    %v5 = vld [vmem:[%s0] sm:%s4]
    %6 = vst [vmem:[#allocation3] sm:%s4] %v5
    %v7 = vld [vmem:[#allocation3] sm:$0x1]
    %vm8 = vcmask 64512
    %9 = vst.msk [vmem:[#allocation2] sm:$0x1] %vm8, %v7
    %v10 = vld [vmem:[#allocation3] sm:$0x1]
    %11 = vrot.lane.b32.xlu0 %v10, 120
    %v12 = vpop.permute.xlu0 %11
    %vm13 = vcmask 64512
    %s14 = scalar_lea.vmem [#allocation2], 1
    %15 = vst.msk [vmem:[%s14] sm:$0x1] %vm13, %v12
    %s17 = ssub.s32 4, 1
    %v18 = vld [vmem:[#allocation2] sm:%s17]
    %s20 = ssub.s32 4, 1
    %21 = vst [vmem:[#allocation0] sm:%s20] %v18
    %23 = vsyncadd [#allocation1], 0
    %s25 = sshll.u32 [#allocation0], 4
    %s26 = int_to_ptr.vmem [resolvable:$true] %s25
    %s27 = sshll.u32 %s1, 4
    %s28 = int_to_ptr.hbm [resolvable:$true] %s27
    %30 = dma.vmem_to_hbm [thread:$0]  %s26, 32, %s28, [#allocation1]
    %32 = dma.done [#allocation1], 32
    %33 = vsyncpa [#allocation1], 1

// kernel: qa_outputs_pallas.1
$region0: #{qa_outputs_pallas.1}
  #allocation0 [shape = 'u32[]', space=smem, size = 0x4, offset = 0x4, fixed_abs, tag = 'smem constant byte address 0x4 - core index']
  #allocation1 [shape = 'u32[72,128]{1,0:T(1,128)}', space=vmem, size = 0x9000, scoped, tag = 'internal scratch']
  %s0 = inlined_call_operand.hbm [shape: f32[16,32], index: 0, kind: input, shape index: {}]
  %s1 = inlined_call_operand.vmem [shape: f32[8,32], index: 1, kind: input, shape index: {}]
  %s2 = inlined_call_operand.vmem [shape: f32[8,1], index: 2, kind: input, shape index: {}]
  %s3 = inlined_call_operand.vmem [shape: f32[8,16], index: 3, kind: output, shape index: {}]
  %s4 = sld [smem:[#allocation0]]
  $region26: #{qa_outputs_pallas.1} parent=0
    _
  %s6 = ssub.s32 1, %s4
  %s7 = scalar_select 0, %s6, %s4
  $region1: #{qa_outputs_pallas.1} parent=0
    #allocation2 [shape = 'u8[8192]{0}', space=vmem, size = 0x2000, scoped, tag = 'input window, operand 0, single buffered']
    #allocation3 [shape = 's32[1]{0}', space=sflag, size = 0x4, scoped, tag = 'scoped memory for qa_outputs_pallas.1']
    %8 = vsyncpa [#allocation3], 0
    // Predicated region
    $region2: #{qa_outputs_pallas.1} parent=1 // pred_check
      _
    $region3: #{qa_outputs_pallas.1} parent=1 // pred_check_branch
      %10 = sbr.rel (0) target = $region5
    $region4: #{qa_outputs_pallas.1} parent=1 // pred_region
      %12 = vsyncadd [#allocation3], 0
      %s13 = sshll.u32 %s0, 4
      %s14 = int_to_ptr.hbm [resolvable:$true] %s13
      %s15 = sshll.u32 [#allocation2], 4
      %s16 = int_to_ptr.vmem [resolvable:$true] %s15
      %21 = dma.hbm_to_vmem [thread:$0]  %s14, 256, %s16, [#allocation3], 128, 128, 8
    $region5: #{qa_outputs_pallas.1} parent=1 // pred_fallthru
      _
    // Predicated region
    $region6: #{qa_outputs_pallas.1} parent=1 // pred_check
      _
    $region7: #{qa_outputs_pallas.1} parent=1 // pred_check_branch
      %23 = sbr.rel (0) target = $region9
    $region8: #{qa_outputs_pallas.1} parent=1 // pred_region
      _
    $region9: #{qa_outputs_pallas.1} parent=1 // pred_fallthru
      _
    // Predicated region
    $region10: #{qa_outputs_pallas.1} parent=1 // pred_check
      _
    $region11: #{qa_outputs_pallas.1} parent=1 // pred_check_branch
      %25 = sbr.rel (0) target = $region13
    $region12: #{qa_outputs_pallas.1} parent=1 // pred_region
      _
    $region13: #{qa_outputs_pallas.1} parent=1 // pred_fallthru
      _
    // Predicated region
    $region14: #{qa_outputs_pallas.1} parent=1 // pred_check
      _
    $region15: #{qa_outputs_pallas.1} parent=1 // pred_check_branch
      %27 = sbr.rel (0) target = $region17
    $region16: #{qa_outputs_pallas.1} parent=1 // pred_region
      %29 = dma.done [#allocation3], 256
    $region17: #{qa_outputs_pallas.1} parent=1 // pred_fallthru
      _
    %v30 = vld [vmem:[%s1] sm:$0xff]
    %v31 = vld [vmem:[#allocation2] sm:$0xff]
    %v32 = vld [vmem:[#allocation2 + $0x8] sm:$0xff]
    %v33 = vld [vmem:[%s2] sm:$0xff]
    %35 = vset.pattern.permute.xlu0 0
    %36 = vperm.xlu0 %35, %v33
    %v37 = vpop.permute.xlu0 %36
    %vm39 = vcmask 261120
    %v41 = vsel %vm39, %v30, 0
    %v44 = vsel %vm39, %v31, 0
    %v47 = vsel %vm39, %v32, 0
    %49 = vmatpush.xpose.msra.mxu0 0.0
    %50 = vmatpush.xpose.msra.mxu0 0.0
    %51 = vmatpush.xpose.msra.mxu0 0.0
    %52 = vmatpush.xpose.msra.mxu0 0.0
    %53 = vmatpush.xpose.msra.mxu0 0.0
    %54 = vmatpush.xpose.msra.mxu0 0.0
    %55 = vmatpush.xpose.msra.mxu0 0.0
    %56 = vmatpush.xpose.msra.mxu0 0.0
    %57 = vmatpush.xpose.msra.mxu0 0.0
    %58 = vmatpush.xpose.msra.mxu0 0.0
    %59 = vmatpush.xpose.msra.mxu0 0.0
    %60 = vmatpush.xpose.msra.mxu0 0.0
    %61 = vmatpush.xpose.msra.mxu0 0.0
    %62 = vmatpush.xpose.msra.mxu0 0.0
    %63 = vmatpush.xpose.msra.mxu0 %v47
    %64 = vmatpush.xpose.msra.mxu0 %v44
    %65 = vmatmul.f32.gmra.mxu0 %v41
    %v66 = vpop.f32.mrf.mxu0
    %v67 = vadd.f32 %v37, %v66
    %68 = vdwg.mxu0
    %vm69 = vcmask 130048
    %70 = vst.msk [vmem:[%s3] sm:$0xff] %vm69, %v67
    // Predicated region
    $region18: #{qa_outputs_pallas.1} parent=1 // pred_check
      _
    $region19: #{qa_outputs_pallas.1} parent=1 // pred_check_branch
      %72 = sbr.rel (0) target = $region21
    $region20: #{qa_outputs_pallas.1} parent=1 // pred_region
      _
    $region21: #{qa_outputs_pallas.1} parent=1 // pred_fallthru
      _
    // Predicated region
    $region22: #{qa_outputs_pallas.1} parent=1 // pred_check
      _
    $region23: #{qa_outputs_pallas.1} parent=1 // pred_check_branch
      %74 = sbr.rel (0) target = $region25
    $region24: #{qa_outputs_pallas.1} parent=1 // pred_region
      _
    $region25: #{qa_outputs_pallas.1} parent=1 // pred_fallthru
      _
    %75 = vsyncpa [#allocation3], 1

</llo_original>
